<compile_context>
chip_gen: v6e
topology: v6e:2x2x1
jax: 0.10.0
libtpu: 0.0.40
codegen_flags: <defaults>
</compile_context>

<pallas_src>
from math import sqrt

import jax
import jax.numpy as jnp
from jax.experimental import pallas as pl
from jax.experimental.pallas import tpu as pltpu

# (multiplicity, l) per irrep block; parities match (0e, 1o, 2e) in both in/out.
IRREPS_IN1 = [(16, 0), (8, 1), (4, 2)]
IRREPS_OUT = [(32, 0), (16, 1), (8, 2)]


def _offsets(irreps):
    offs, o = [], 0
    for mul, l in irreps:
        offs.append(o)
        o += mul * (2 * l + 1)
    return offs, o


IN_OFFS, D_IN = _offsets(IRREPS_IN1)     # D_IN  = 60
OUT_OFFS, D_OUT = _offsets(IRREPS_OUT)   # D_OUT = 120

ROW_ALIGN = 16          # covers f32 (8) and bf16 (16) sublane tiles


# ---------------------------------------------------------------------------
# Deterministic parameter construction (mirrors tensor_product_init/vectorise)
# ---------------------------------------------------------------------------
def build_params(key):
    w_full = jnp.zeros((D_IN, D_OUT), jnp.float32)
    corr = jnp.zeros((D_OUT,), jnp.float32)       # sqrt_k_correction
    bias_full = jnp.zeros((D_OUT,), jnp.float32)  # zeros outside l=0 slices
    paths = []                                     # for the pure-JAX reference

    keys = jax.random.split(key, 2 * len(IRREPS_OUT))
    for idx, ((mul_in, l), (mul_out, l_out)) in enumerate(zip(IRREPS_IN1, IRREPS_OUT)):
        assert l == l_out
        ir_dim = 2 * l + 1
        fan_in = mul_in * 1                        # mul_1 * mul_2 (mul_2 = 1)
        sqrt_k = 1.0 / sqrt(fan_in)                # tp_rescale=True

        # tp weight view for this instruction: (mul_1, mul_2=1, mul_out), U(-sqrt_k, sqrt_k)
        w = jax.random.uniform(keys[2 * idx], (mul_in, mul_out), jnp.float32,
                               minval=-sqrt_k, maxval=sqrt_k)

        c_l = sqrt(ir_dim / fan_in)                # 'component' / 'element' normalization
        cg = jnp.eye(ir_dim, dtype=jnp.float32) / sqrt(ir_dim)   # w3j(l, 0e, l)
        w_exp = c_l * jnp.kron(w, cg)              # (mul_in*ir_dim, mul_out*ir_dim)

        i0, o0 = IN_OFFS[idx], OUT_OFFS[idx]
        w_full = w_full.at[i0:i0 + mul_in * ir_dim, o0:o0 + mul_out * ir_dim].set(w_exp)
        corr = corr.at[o0:o0 + mul_out * ir_dim].set(sqrt_k)

        if l == 0:                                 # bias only on scalar output slices
            b = jax.random.uniform(keys[2 * idx + 1], (mul_out,), jnp.float32,
                                   minval=-sqrt_k, maxval=sqrt_k)
            bias_full = bias_full.at[o0:o0 + mul_out].set(b)

        paths.append((l, i0, mul_in, o0, mul_out, w))

    # Fold the per-column 1/sqrt_k_correction into the weight (build-time, f32):
    #   out = (x @ W)/corr + bias  ==  x @ (W/corr) + bias
    w_div = w_full / corr[None, :]                 # (D_IN, D_OUT) f32

    return (w_div,
            bias_full.reshape(1, D_OUT),
            corr.reshape(1, D_OUT),
            paths)


# ---------------------------------------------------------------------------
# Pallas kernel: per batch tile, one MXU matmul + f32 VPU bias epilogue.
# x is cast to the (build-time chosen) weight dtype inside the kernel; the
# accumulator is f32; the store casts once to the requested output dtype.
# ---------------------------------------------------------------------------
def o3_tp_kernel(x_ref, w_ref, b_ref, o_ref):
    x = x_ref[...].astype(w_ref.dtype)
    acc = jnp.dot(x, w_ref[...], preferred_element_type=jnp.float32)
    o_ref[...] = (acc + b_ref[...]).astype(o_ref.dtype)


def _pick_tile_n(n_rows, max_tile=8192):
    """Large row tiles; keep >= 2 grid steps when possible (megacore)."""
    if n_rows <= 2 * ROW_ALIGN:
        return n_rows                              # single full-extent tile
    if n_rows <= max_tile:
        half = -(-n_rows // 2)
        return -(-half // ROW_ALIGN) * ROW_ALIGN   # ~half, rounded up to 16 rows
    return max_tile


def o3_tensor_product(x, w_c, bias, *, out_dtype=None, max_tile=8192,
                      use_pallas=None, min_pallas_rows=256):
    """out = x @ (W/corr) + bias, matching O3TensorProduct.forward(data_in1).

    x:    (N, D_IN) activations (any float dtype; cast to w_c.dtype in-kernel)
    w_c:  (D_IN, D_OUT) weight with 1/sqrt_k_correction folded in, stored in
          the desired compute dtype (f32 for exact semantics, bf16 for speed).
    bias: (1, D_OUT) f32 bias (nonzero only on l=0 output slices).
    """
    n, d_in = x.shape
    assert d_in == D_IN and w_c.shape == (D_IN, D_OUT) and bias.shape == (1, D_OUT)
    if out_dtype is None:
        out_dtype = x.dtype
    if use_pallas is None:
        use_pallas = n >= min_pallas_rows

    if not use_pallas:
        # Small-N fast path: one fused XLA dot beats the pallas_call launch cost.
        acc = jnp.dot(x.astype(w_c.dtype), w_c, preferred_element_type=jnp.float32)
        return (acc + bias).astype(out_dtype)

    tile_n = _pick_tile_n(n, max_tile)
    grid = (pl.cdiv(n, tile_n),)                   # last block may be partial (masked)

    return pl.pallas_call(
        o3_tp_kernel,
        out_shape=jax.ShapeDtypeStruct((n, D_OUT), out_dtype),
        grid_spec=pltpu.PrefetchScalarGridSpec(
            num_scalar_prefetch=0,
            grid=grid,
            in_specs=[
                # Block last dims equal the full array dims -> (8,128) rule OK.
                pl.BlockSpec((tile_n, D_IN), lambda i: (i, 0)),
                # Constant index_map -> weight/bias stay VMEM-resident across steps.
                pl.BlockSpec((D_IN, D_OUT), lambda i: (0, 0)),
                pl.BlockSpec((1, D_OUT), lambda i: (0, 0)),
            ],
            out_specs=pl.BlockSpec((tile_n, D_OUT), lambda i: (i, 0)),
        ),
        compiler_params=pltpu.CompilerParams(
            dimension_semantics=("parallel",),
            vmem_limit_bytes=32 * 1024 * 1024,     # v5e default (16 MiB) is too tight at 8192 rows
        ),
    )(x, w_c, bias)


# ---------------------------------------------------------------------------
# Pure-JAX reference mirroring the PyTorch forward path-by-path.
# ---------------------------------------------------------------------------
def reference_forward(x, paths, corr, bias_full):
    n = x.shape[0]
    out = jnp.zeros((n, D_OUT), jnp.float32)
    for l, i0, mul_in, o0, mul_out, w in paths:
        ir = 2 * l + 1
        xb = x[:, i0:i0 + mul_in * ir].reshape(n, mul_in, ir)
        c = sqrt(ir / mul_in)
        cg = jnp.eye(ir, dtype=jnp.float32) / sqrt(ir)
        yb = c * jnp.einsum('num,uv,mk->nvk', xb, w, cg,
                            precision=jax.lax.Precision.HIGHEST)
        out = out.at[:, o0:o0 + mul_out * ir].set(yb.reshape(n, mul_out * ir))
    out = out / corr            # data_out /= sqrt_k_correction
    out = out + bias_full       # data_out[:, bias_idx] += biases
    return out


if __name__ == "__main__":
    key = jax.random.PRNGKey(0)
    k_param, k_x1, k_x2 = jax.random.split(key, 3)

    w_f32, bias, corr, paths = build_params(k_param)
    w_bf16 = w_f32.astype(jnp.bfloat16)            # hoisted compute-dtype cast (once)

    # --- small batch, f32 weights + f32 output (exact module semantics),
    #     Pallas path forced so the kernel is exercised even at small N.
    N1 = 64
    x1 = jax.random.normal(k_x1, (N1, D_IN), jnp.float32)
    ref1 = reference_forward(x1, paths, corr, bias)

    out_f32 = jax.block_until_ready(
        o3_tensor_product(x1, w_f32, bias, use_pallas=True))
    assert out_f32.shape == (N1, D_OUT) and out_f32.dtype == jnp.float32
    assert jnp.allclose(out_f32, ref1, rtol=1e-3, atol=1e-3), \
        float(jnp.abs(out_f32 - ref1).max())

    # --- uneven batch (exercises the masked partial last tile), bf16 compute
    #     weights + bf16 output (halves the dominant HBM write stream); the
    #     bias stays an exact f32 epilogue add inside the kernel.
    N2 = 200
    x2 = jax.random.normal(k_x2, (N2, D_IN), jnp.float32)
    ref2 = reference_forward(x2, paths, corr, bias)

    out_bf16 = jax.block_until_ready(
        o3_tensor_product(x2, w_bf16, bias, out_dtype=jnp.bfloat16, use_pallas=True))
    assert out_bf16.shape == (N2, D_OUT) and out_bf16.dtype == jnp.bfloat16
    assert jnp.allclose(out_bf16.astype(jnp.float32), ref2, rtol=4e-2, atol=4e-2), \
        float(jnp.abs(out_bf16.astype(jnp.float32) - ref2).max())

    # --- small-N auto fast path (plain fused dot below min_pallas_rows).
    out_fast = jax.block_until_ready(o3_tensor_product(x1, w_f32, bias))
    assert jnp.allclose(out_fast, ref1, rtol=1e-3, atol=1e-3), \
        float(jnp.abs(out_fast - ref1).max())

    print("KERNEL_OK")
</pallas_src>

<mosaic_0001>
module attributes {stable_mosaic.version = 11 : i64} {
  func.func @o3_tp_kernel(%arg0: i32, %arg1: memref<32x60xf32, #tpu.memory_space<vmem>>, %arg2: memref<60x120xf32, #tpu.memory_space<vmem>>, %arg3: memref<1x120xf32, #tpu.memory_space<vmem>>, %arg4: memref<32x120xf32, #tpu.memory_space<vmem>>) attributes {dimension_semantics = [#tpu.dimension_semantics<parallel>], iteration_bounds = array<i64: 2>, scalar_prefetch = 0 : i64, scratch_operands = 0 : i64, tpu.core_type = #tpu.core_type<tc>, window_params = [{transform_indices = @transform_0, window_bounds = array<i64: 32, 60>}, {pipeline_mode = #tpu.pipeline_mode<synchronous>, transform_indices = @transform_1, window_bounds = array<i64: 60, 120>}, {pipeline_mode = #tpu.pipeline_mode<synchronous>, transform_indices = @transform_2, window_bounds = array<i64: 1, 120>}, {transform_indices = @transform_3, window_bounds = array<i64: 32, 120>}]} {
    %c0 = arith.constant 0 : index
    %c0_0 = arith.constant 0 : index
    %0 = vector.load %arg1[%c0, %c0_0] : memref<32x60xf32, #tpu.memory_space<vmem>>, vector<32x60xf32>
    %c0_1 = arith.constant 0 : index
    %c0_2 = arith.constant 0 : index
    %1 = vector.load %arg2[%c0_1, %c0_2] : memref<60x120xf32, #tpu.memory_space<vmem>>, vector<60x120xf32>
    %cst = arith.constant dense<0.000000e+00> : vector<32x120xf32>
    %2 = tpu.matmul %0, %1, %cst {dimension_numbers = #tpu.dot_dimension_numbers<[1], [0], [0], [1], [0, 0, 1, 1], [], []>} : vector<32x60xf32>, vector<60x120xf32>, vector<32x120xf32> -> vector<32x120xf32>
    %c0_3 = arith.constant 0 : index
    %c0_4 = arith.constant 0 : index
    %3 = vector.load %arg3[%c0_3, %c0_4] : memref<1x120xf32, #tpu.memory_space<vmem>>, vector<1x120xf32>
    %4 = vector.broadcast %3 : vector<1x120xf32> to vector<32x120xf32>
    %5 = arith.addf %2, %4 : vector<32x120xf32>
    %c0_5 = arith.constant 0 : index
    %c0_6 = arith.constant 0 : index
    %6 = vector.load %arg4[%c0_5, %c0_6] : memref<32x120xf32, #tpu.memory_space<vmem>>, vector<32x120xf32>
    tpu.vector_store %arg4[%c0_5, %c0_6], %5 {strides = array<i32>} : memref<32x120xf32, #tpu.memory_space<vmem>>, vector<32x120xf32>,
    return
  }
  func.func @transform_0(%arg0: i32) -> (i32, i32) {
    %c0_i32 = arith.constant 0 : i32
    %c0_i32_0 = arith.constant 0 : i32
    return %arg0, %c0_i32 : i32, i32
  }
  func.func @transform_1(%arg0: i32) -> (i32, i32) {
    %c0_i32 = arith.constant 0 : i32
    %c0_i32_0 = arith.constant 0 : i32
    %c0_i32_1 = arith.constant 0 : i32
    return %c0_i32, %c0_i32_0 : i32, i32
  }
  func.func @transform_2(%arg0: i32) -> (i32, i32) {
    %c0_i32 = arith.constant 0 : i32
    %c0_i32_0 = arith.constant 0 : i32
    %c0_i32_1 = arith.constant 0 : i32
    return %c0_i32, %c0_i32_0 : i32, i32
  }
  func.func @transform_3(%arg0: i32) -> (i32, i32) {
    %c0_i32 = arith.constant 0 : i32
    %c0_i32_0 = arith.constant 0 : i32
    return %arg0, %c0_i32 : i32, i32
  }
}

</mosaic_0001>

<llo_original>
// kernel: tpu_custom_call.1
$region0: #{tpu_custom_call.1}
  #allocation0 [shape = 'u32[]', space=smem, size = 0x4, offset = 0x4, fixed_abs, tag = 'smem constant byte address 0x4 - core index']
  #allocation1 [shape = 'u32[144,128]{1,0:T(1,128)}', space=vmem, size = 0x12000, scoped, tag = 'internal scratch']
  %s0 = inlined_call_operand.hbm [shape: f32[64,60], index: 0, kind: input, shape index: {}]
  %s1 = inlined_call_operand.hbm [shape: f32[60,120], index: 1, kind: input, shape index: {}]
  %s2 = inlined_call_operand.vmem [shape: f32[1,120], index: 2, kind: input, shape index: {}]
  %s3 = inlined_call_operand.hbm [shape: f32[64,120], index: 3, kind: output, shape index: {}]
  %s4 = sld [smem:[#allocation0]]
  $region53: #{tpu_custom_call.1} parent=0
    _
  %s6 = ssub.s32 1, %s4
  %s7 = scalar_select 0, %s6, %s4
  $region1: #{tpu_custom_call.1} parent=0
    #allocation2 [shape = 'u8[32768]{0}', space=vmem, size = 0x8000, scoped, tag = 'input window, operand 0']
    #allocation3 [shape = 's32[2]{0}', space=sflag, size = 0x8, scoped, tag = 'scoped memory for tpu_custom_call.1']
    #allocation4 [shape = 's32[2]{0}', space=sflag, size = 0x8, scoped, tag = 'scoped memory for tpu_custom_call.1']
    #allocation5 [shape = 'u8[32768]{0}', space=vmem, size = 0x8000, scoped, tag = 'input window, operand 1, single buffered']
    #allocation6 [shape = 's32[1]{0}', space=sflag, size = 0x4, scoped, tag = 'scoped memory for tpu_custom_call.1']
    #allocation7 [shape = 'u8[32768]{0}', space=vmem, size = 0x8000, scoped, tag = 'output window, operand 0']
    %8 = vsyncpa [#allocation3], 0
    %s9 = scalar_lea.sflag [#allocation3], 1
    %10 = vsyncpa %s9, 0
    %11 = vsyncpa [#allocation6], 0
    %12 = vsyncpa [#allocation4], 0
    %s13 = scalar_lea.sflag [#allocation4], 1
    %14 = vsyncpa %s13, 0
    loop: start=0, step=1, limit=4
    $region2: #{tpu_custom_call.1} parent=1 // loop_pre_header
      _
    $region3: #{tpu_custom_call.1} parent=1 // loop_header
      %s16 = sphi 0, %s20
      %p17 = scmp.ge.s32.totalorder %s16, 4
      %s26 = sphi 0, %s28
      %s29 = sphi 0, %s26
      %s30 = sphi 0, %s29
      %s46 = sphi 0, %s30
      %s50 = sphi 0, %s50
      %s52 = sphi 0, %s50
      %s53 = sphi 0, %s52
      %s67 = sphi 0, %s53
      %s71 = sphi 0, %s71
      %s73 = sphi 0, %s71
      %s74 = sphi 0, %s73
      %s88 = sphi 0, %s74
      %s94 = sphi 0, %s96
      %s97 = sphi 0, %s94
      %s98 = sphi 0, %s97
      %s114 = sphi 0, %s98
    $region4: #{tpu_custom_call.1} parent=1 // loop_header_branch
      %19 = sbr.rel (%p17) target = $region8
    $region5: #{tpu_custom_call.1} parent=1 // loop_body
      %s21 = ssub.s32 %s16, 1
      %s22 = ssub.s32 %s16, 2
      %s23 = sadd.s32 %s16, 1
      %s24 = ssub.s32 %s16, %s23
      %p25 = scmp.eq.s32.totalorder %s24, 0
      %s27 = sadd.s32 %s26, 1
      %s28 = scalar_select %p25, %s26, %s27
      %p31 = pneg %p25
      %p32 = scmp.eq.s32.totalorder %s16, 1
      %p33 = por %p31, %p32
      %p34 = scmp.ne.s32.totalorder %s26, %s29
      %p35 = scmp.eq.s32.totalorder %s16, 0
      %p36 = por %p34, %p35
      %p37 = scmp.ne.s32.totalorder %s26, %s29
      %p38 = scmp.eq.s32.totalorder %s21, 1
      %p39 = por %p37, %p38
      %p40 = scmp.ne.s32.totalorder %s29, %s30
      %p41 = scmp.eq.s32.totalorder %s21, 0
      %p42 = por %p40, %p41
      %p43 = scmp.ne.s32.totalorder %s29, %s30
      %p44 = scmp.eq.s32.totalorder %s22, 1
      %p45 = por %p43, %p44
      %p47 = scmp.ne.s32.totalorder %s30, %s46
      %p48 = scmp.eq.s32.totalorder %s22, 0
      %p49 = por %p47, %p48
      %s51 = sadd.s32 %s50, 1
      %p54 = scmp.eq.s32.totalorder %s16, 1
      %p55 = scmp.ne.s32.totalorder %s50, %s52
      %p56 = scmp.eq.s32.totalorder %s16, 0
      %p57 = por %p55, %p56
      %p58 = scmp.ne.s32.totalorder %s50, %s52
      %p59 = scmp.eq.s32.totalorder %s21, 1
      %p60 = por %p58, %p59
      %p61 = scmp.ne.s32.totalorder %s52, %s53
      %p62 = scmp.eq.s32.totalorder %s21, 0
      %p63 = por %p61, %p62
      %p64 = scmp.ne.s32.totalorder %s52, %s53
      %p65 = scmp.eq.s32.totalorder %s22, 1
      %p66 = por %p64, %p65
      %p68 = scmp.ne.s32.totalorder %s53, %s67
      %p69 = scmp.eq.s32.totalorder %s22, 0
      %p70 = por %p68, %p69
      %s72 = sadd.s32 %s71, 1
      %p75 = scmp.eq.s32.totalorder %s16, 1
      %p76 = scmp.ne.s32.totalorder %s71, %s73
      %p77 = scmp.eq.s32.totalorder %s16, 0
      %p78 = por %p76, %p77
      %p79 = scmp.ne.s32.totalorder %s71, %s73
      %p80 = scmp.eq.s32.totalorder %s21, 1
      %p81 = por %p79, %p80
      %p82 = scmp.ne.s32.totalorder %s73, %s74
      %p83 = scmp.eq.s32.totalorder %s21, 0
      %p84 = por %p82, %p83
      %p85 = scmp.ne.s32.totalorder %s73, %s74
      %p86 = scmp.eq.s32.totalorder %s22, 1
      %p87 = por %p85, %p86
      %p89 = scmp.ne.s32.totalorder %s74, %s88
      %p90 = scmp.eq.s32.totalorder %s22, 0
      %p91 = por %p89, %p90
      %s92 = ssub.s32 %s16, %s23
      %p93 = scmp.eq.s32.totalorder %s92, 0
      %s95 = sadd.s32 %s94, 1
      %s96 = scalar_select %p93, %s94, %s95
      %p99 = pneg %p93
      %p100 = scmp.eq.s32.totalorder %s16, 1
      %p101 = por %p99, %p100
      %p102 = scmp.ne.s32.totalorder %s94, %s97
      %p103 = scmp.eq.s32.totalorder %s16, 0
      %p104 = por %p102, %p103
      %p105 = scmp.ne.s32.totalorder %s94, %s97
      %p106 = scmp.eq.s32.totalorder %s21, 1
      %p107 = por %p105, %p106
      %p108 = scmp.ne.s32.totalorder %s97, %s98
      %p109 = scmp.eq.s32.totalorder %s21, 0
      %p110 = por %p108, %p109
      %p111 = scmp.ne.s32.totalorder %s97, %s98
      %p112 = scmp.eq.s32.totalorder %s22, 1
      %p113 = por %p111, %p112
      %p115 = scmp.ne.s32.totalorder %s98, %s114
      %p116 = scmp.eq.s32.totalorder %s22, 0
      %p117 = por %p115, %p116
      %p118 = scmp.le.s32.totalorder 1, %s16
      %p119 = scmp.lt.s32.totalorder %s16, 3
      %p120 = pnand %p118, %p119
      %p121 = pneg %p120
      // Predicated region
      $region9: #{tpu_custom_call.1} parent=5 // pred_check
        _
      $region10: #{tpu_custom_call.1} parent=5 // pred_check_branch
        %123 = sbr.rel (%p120) target = $region12
      $region11: #{tpu_custom_call.1} parent=5 // pred_region
        %s124 = ssub.s32 %s16, 1
        // Predicated region
        $region13: #{tpu_custom_call.1} parent=11 // pred_check
          %p125 = pneg %p63
        $region14: #{tpu_custom_call.1} parent=11 // pred_check_branch
          %127 = sbr.rel (%p125) target = $region16
        $region15: #{tpu_custom_call.1} parent=11 // pred_region
          %s129 = ssub.s32 1024, 1024
          %130 = vsyncadd [#allocation6], %s129
          %s131 = sshll.u32 [#allocation5], 4
          %s132 = int_to_ptr.vmem [resolvable:$true] %s131
          %137 = dma.hbm_to_vmem [thread:$0]  %s1, 1024, %s132, [#allocation6], 128, 128, 8
        $region16: #{tpu_custom_call.1} parent=11 // pred_fallthru
          _
        // Predicated region
        $region17: #{tpu_custom_call.1} parent=11 // pred_check
          %p138 = pneg %p84
        $region18: #{tpu_custom_call.1} parent=11 // pred_check_branch
          %140 = sbr.rel (%p138) target = $region20
        $region19: #{tpu_custom_call.1} parent=11 // pred_region
          _
        $region20: #{tpu_custom_call.1} parent=11 // pred_fallthru
          _
      $region12: #{tpu_custom_call.1} parent=5 // pred_fallthru
        _
      %p141 = scmp.lt.s32.totalorder %s16, 2
      // Predicated region
      $region21: #{tpu_custom_call.1} parent=5 // pred_check
        %p142 = pneg %p141
      $region22: #{tpu_custom_call.1} parent=5 // pred_check_branch
        %144 = sbr.rel (%p142) target = $region24
      $region23: #{tpu_custom_call.1} parent=5 // pred_region
        // Predicated region
        $region25: #{tpu_custom_call.1} parent=23 // pred_check
          %p145 = pneg %p36
        $region26: #{tpu_custom_call.1} parent=23 // pred_check_branch
          %147 = sbr.rel (%p145) target = $region28
        $region27: #{tpu_custom_call.1} parent=23 // pred_region
          %s148 = sand.u32 %s26, 1
          %s149 = scalar_lea.sflag [#allocation3], %s148
          %s150 = sand.u32 %s26, 1
          %s151 = smul.addr %s150, 32
          %s152 = scalar_lea.vmem [#allocation2], %s151
          %s153 = smul.u32 4, %s16
          %s155 = ssub.s32 512, 512
          %156 = vsyncadd %s149, %s155
          %s157 = smul.addr %s153, 128
          %s158 = scalar_lea.hbm %s0, %s157
          %s159 = sshll.u32 %s152, 4
          %s160 = int_to_ptr.vmem [resolvable:$true] %s159
          %165 = dma.hbm_to_vmem [thread:$0]  %s158, 512, %s160, %s149, 128, 128, 8
        $region28: #{tpu_custom_call.1} parent=23 // pred_fallthru
          _
      $region24: #{tpu_custom_call.1} parent=5 // pred_fallthru
        _
      %p166 = scmp.le.s32.totalorder 1, %s16
      %p167 = scmp.lt.s32.totalorder %s16, 3
      %p168 = pnand %p166, %p167
      %p169 = pneg %p168
      // Predicated region
      $region29: #{tpu_custom_call.1} parent=5 // pred_check
        _
      $region30: #{tpu_custom_call.1} parent=5 // pred_check_branch
        %171 = sbr.rel (%p168) target = $region32
      $region31: #{tpu_custom_call.1} parent=5 // pred_region
        %s172 = ssub.s32 %s16, 1
        %s173 = sand.u32 %s29, 1
        %s174 = scalar_lea.sflag [#allocation3], %s173
        %s175 = sand.u32 %s29, 1
        %s176 = smul.addr %s175, 32
        %s177 = scalar_lea.vmem [#allocation2], %s176
        // Predicated region
        $region33: #{tpu_custom_call.1} parent=31 // pred_check
          %p178 = pneg %p42
        $region34: #{tpu_custom_call.1} parent=31 // pred_check_branch
          %180 = sbr.rel (%p178) target = $region36
        $region35: #{tpu_custom_call.1} parent=31 // pred_region
          %181 = dma.done %s174, 512
        $region36: #{tpu_custom_call.1} parent=31 // pred_fallthru
          _
        // Predicated region
        $region37: #{tpu_custom_call.1} parent=31 // pred_check
          %p182 = pneg %p63
        $region38: #{tpu_custom_call.1} parent=31 // pred_check_branch
          %184 = sbr.rel (%p182) target = $region40
        $region39: #{tpu_custom_call.1} parent=31 // pred_region
          %185 = dma.done [#allocation6], 1024
        $region40: #{tpu_custom_call.1} parent=31 // pred_fallthru
          _
        %s186 = sand.u32 %s29, 1
        %s187 = scalar_lea.sflag [#allocation3], %s186
        %s188 = sand.u32 %s29, 1
        %s189 = smul.addr %s188, 32
        %s190 = scalar_lea.vmem [#allocation2], %s189
        %p191 = pneg %p42
        %p192 = pneg %p39
        %p193 = pneg %p63
        %p194 = pneg %p60
        %p195 = pneg %p84
        %p196 = pneg %p81
        %p197 = pneg %p110
        %p198 = pneg %p107
        %s199 = sand.u32 %s97, 1
        %s200 = scalar_lea.sflag [#allocation4], %s199
        %s201 = sand.u32 %s97, 1
        %s202 = smul.addr %s201, 32
        %s203 = scalar_lea.vmem [#allocation7], %s202
        %s204 = smul.u32 4, %s21
        %s205 = smul.u32 4, %s21
        %v206 = vld [vmem:[%s177] sm:$0xff]
        %v207 = vld [vmem:[%s177 + $0x8] sm:$0xff]
        %v208 = vld [vmem:[%s177 + $0x10] sm:$0xff]
        %v209 = vld [vmem:[%s177 + $0x18] sm:$0xff]
        %v210 = vld [vmem:[#allocation5] sm:$0xff]
        %v211 = vld [vmem:[#allocation5 + $0x8] sm:$0xff]
        %v212 = vld [vmem:[#allocation5 + $0x10] sm:$0xff]
        %v213 = vld [vmem:[#allocation5 + $0x18] sm:$0xff]
        %v214 = vld [vmem:[#allocation5 + $0x20] sm:$0xff]
        %v215 = vld [vmem:[#allocation5 + $0x28] sm:$0xff]
        %v216 = vld [vmem:[#allocation5 + $0x30] sm:$0xff]
        %v217 = vld [vmem:[#allocation5 + $0x38] sm:$0xf]
        %v218 = vld [vmem:[%s2] sm:$0x1]
        %v220 = vlaneseq
        %v221 = vshrl.u32 %v220, 7
        %v222 = vsub.s32 0, %v221
        %v223 = vrot.slane %v218, %v222
        %vm225 = vcmask 490496
        %v227 = vsel %vm225, %v206, 0
        %v230 = vsel %vm225, %v207, 0
        %v233 = vsel %vm225, %v208, 0
        %v236 = vsel %vm225, %v209, 0
        %vm238 = vcmask 1043456
        %v240 = vsel %vm238, %v217, 0
        %242 = vmatprep.subr.mxu0 0.0
        %243 = vmatpush1.msra.mxu0 0.0
        %244 = vmatprep.subr.mxu0 0.0
        %245 = vmatpush1.msra.mxu0 0.0
        %246 = vmatprep.subr.mxu0 0.0
        %247 = vmatpush1.msra.mxu0 0.0
        %248 = vmatprep.subr.mxu0 0.0
        %249 = vmatpush1.msra.mxu0 0.0
        %250 = vmatprep.subr.mxu0 0.0
        %251 = vmatpush1.msra.mxu0 0.0
        %252 = vmatprep.subr.mxu0 0.0
        %253 = vmatpush1.msra.mxu0 0.0
        %254 = vmatprep.subr.mxu0 0.0
        %255 = vmatpush1.msra.mxu0 0.0
        %256 = vmatprep.subr.mxu0 0.0
        %257 = vmatpush1.msra.mxu0 0.0
        %258 = vmatprep.subr.mxu0 0.0
        %259 = vmatpush1.msra.mxu0 %v240
        %260 = vmatprep.subr.mxu0 0.0
        %261 = vmatpush1.msra.mxu0 %v216
        %262 = vmatprep.subr.mxu0 0.0
        %263 = vmatpush1.msra.mxu0 %v215
        %264 = vmatprep.subr.mxu0 0.0
        %265 = vmatpush1.msra.mxu0 %v214
        %266 = vmatprep.subr.mxu0 0.0
        %267 = vmatpush1.msra.mxu0 %v213
        %268 = vmatprep.subr.mxu0 0.0
        %269 = vmatpush1.msra.mxu0 %v212
        %270 = vmatprep.subr.mxu0 0.0
        %271 = vmatpush1.msra.mxu0 %v211
        %272 = vmatprep.subr.mxu0 0.0
        %273 = vmatpush1.msra.mxu0 %v210
        %274 = vmatprep.subr.mxu0 0.0
        %275 = vmatpush2.msra.mxu0 0.0
        %276 = vmatprep.subr.mxu0 0.0
        %277 = vmatpush2.msra.mxu0 0.0
        %278 = vmatprep.subr.mxu0 0.0
        %279 = vmatpush2.msra.mxu0 0.0
        %280 = vmatprep.subr.mxu0 0.0
        %281 = vmatpush2.msra.mxu0 0.0
        %282 = vmatprep.subr.mxu0 0.0
        %283 = vmatpush2.msra.mxu0 0.0
        %284 = vmatprep.subr.mxu0 0.0
        %285 = vmatpush2.msra.mxu0 0.0
        %286 = vmatprep.subr.mxu0 0.0
        %287 = vmatpush2.msra.mxu0 0.0
        %288 = vmatprep.subr.mxu0 0.0
        %289 = vmatpush2.msra.mxu0 0.0
        %290 = vmatprep.subr.mxu0 0.0
        %291 = vmatpush2.msra.mxu0 0.0
        %292 = vmatprep.subr.mxu0 0.0
        %293 = vmatpush2.msra.mxu0 0.0
        %294 = vmatprep.subr.mxu0 0.0
        %295 = vmatpush2.msra.mxu0 0.0
        %296 = vmatprep.subr.mxu0 0.0
        %297 = vmatpush2.msra.mxu0 0.0
        %298 = vmatprep.subr.mxu0 0.0
        %299 = vmatpush2.msra.mxu0 0.0
        %300 = vmatprep.subr.mxu0 0.0
        %301 = vmatpush2.msra.mxu0 0.0
        %302 = vmatprep.subr.mxu0 0.0
        %303 = vmatpush2.msra.mxu0 0.0
        %304 = vmatprep.subr.mxu0 0.0
        %305 = vmatpush2.msra.mxu0 0.0
        %306 = vmatprep.mubr.f32.mxu0 0.0
        %307 = vmatmul.mubr.f32.gmra.mxu0 %v227
        %v308 = vpop.f32.mrf.mxu0
        %v309 = vadd.f32 %v223, %v308
        %v310 = vpop.f32.mrf.mxu0
        %311 = vmatprep.mubr.f32.mxu0 0.0
        %312 = vmatmul.mubr.f32.gmra.mxu0 %v230
        %v313 = vpop.f32.mrf.mxu0
        %v314 = vadd.f32 %v223, %v313
        %v315 = vpop.f32.mrf.mxu0
        %316 = vmatprep.mubr.f32.mxu0 0.0
        %317 = vmatmul.mubr.f32.gmra.mxu0 %v233
        %v318 = vpop.f32.mrf.mxu0
        %v319 = vadd.f32 %v223, %v318
        %v320 = vpop.f32.mrf.mxu0
        %321 = vmatprep.mubr.f32.mxu0 0.0
        %322 = vmatmul.mubr.f32.gmra.mxu0 %v236
        %v323 = vpop.f32.mrf.mxu0
        %v324 = vadd.f32 %v223, %v323
        %v325 = vpop.f32.mrf.mxu0
        %326 = vdwg.mxu0
        %vm327 = vcmask 982016
        %328 = vst.msk [vmem:[%s203] sm:$0xff] %vm327, %v309
        %329 = vst.msk [vmem:[%s203 + $0x8] sm:$0xff] %vm327, %v314
        %330 = vst.msk [vmem:[%s203 + $0x10] sm:$0xff] %vm327, %v319
        %331 = vst.msk [vmem:[%s203 + $0x18] sm:$0xff] %vm327, %v324
        %s332 = sand.u32 %s97, 1
        %s333 = scalar_lea.sflag [#allocation4], %s332
        %s334 = sand.u32 %s97, 1
        %s335 = smul.addr %s334, 32
        %s336 = scalar_lea.vmem [#allocation7], %s335
        // Predicated region
        $region41: #{tpu_custom_call.1} parent=31 // pred_check
          %p337 = pneg %p107
        $region42: #{tpu_custom_call.1} parent=31 // pred_check_branch
          %339 = sbr.rel (%p337) target = $region44
        $region43: #{tpu_custom_call.1} parent=31 // pred_region
          %s340 = smul.u32 4, %s21
          %s342 = ssub.s32 512, 512
          %343 = vsyncadd %s333, %s342
          %s344 = smul.addr %s340, 128
          %s345 = scalar_lea.hbm %s3, %s344
          %s346 = sshll.u32 %s336, 4
          %s347 = int_to_ptr.vmem [resolvable:$true] %s346
          %352 = dma.vmem_to_hbm [thread:$0]  %s347, 512, %s345, %s333, 128, 128, 8
        $region44: #{tpu_custom_call.1} parent=31 // pred_fallthru
          _
      $region32: #{tpu_custom_call.1} parent=5 // pred_fallthru
        _
      %p353 = scmp.le.s32.totalorder 2, %s16
      // Predicated region
      $region45: #{tpu_custom_call.1} parent=5 // pred_check
        %p354 = pneg %p353
      $region46: #{tpu_custom_call.1} parent=5 // pred_check_branch
        %356 = sbr.rel (%p354) target = $region48
      $region47: #{tpu_custom_call.1} parent=5 // pred_region
        %s357 = ssub.s32 %s16, 2
        // Predicated region
        $region49: #{tpu_custom_call.1} parent=47 // pred_check
          %p358 = pneg %p113
        $region50: #{tpu_custom_call.1} parent=47 // pred_check_branch
          %360 = sbr.rel (%p358) target = $region52
        $region51: #{tpu_custom_call.1} parent=47 // pred_region
          %s361 = sand.u32 %s98, 1
          %s362 = scalar_lea.sflag [#allocation4], %s361
          %s363 = sand.u32 %s98, 1
          %s364 = smul.addr %s363, 32
          %s365 = scalar_lea.vmem [#allocation7], %s364
          %366 = dma.done %s362, 512
        $region52: #{tpu_custom_call.1} parent=47 // pred_fallthru
          _
      $region48: #{tpu_custom_call.1} parent=5 // pred_fallthru
        _
    $region6: #{tpu_custom_call.1} parent=1 // loop_footer
      %s20 = sadd.s32 1, %s16
    $region7: #{tpu_custom_call.1} parent=1 // loop_footer_branch
      %15 = sbr.rel target = $region3
    $region8: #{tpu_custom_call.1} parent=1 // loop_exit
      _
    %367 = vsyncpa [#allocation3], 1
    %s368 = scalar_lea.sflag [#allocation3], 1
    %369 = vsyncpa %s368, 1
    %370 = vsyncpa [#allocation6], 1
    %371 = vsyncpa [#allocation4], 1
    %s372 = scalar_lea.sflag [#allocation4], 1
    %373 = vsyncpa %s372, 1

</llo_original>
